<compile_context>
chip_gen: v5e
topology: v5e:2x2
jax: 0.10.0
libtpu: 0.0.40
codegen_flags: <defaults>
</compile_context>

<pallas_src>
import functools

import jax
import jax.numpy as jnp
from jax.experimental import pallas as pl
from jax.experimental.pallas import tpu as pltpu


def _attention_kernel(x_ref, o_ref, *, summary_scale):
    # x_ref: (TB, S, D) tile in VMEM; o_ref: (TB, S) tile in VMEM.
    # Whole contraction stays in f32 on the VPU/XLU: the batched einsum here is
    # an M=1 matmul (tiny MXU utilization) and, because the contraction is over
    # the lane dim, forces (S, D)->(D, S) relayouts. A fused multiply + lane
    # reduce avoids that and gives f32 accumulation for free (kernel is
    # HBM-bound, so the compute-unit choice does not show on wall clock).
    xf = x_ref[...].astype(jnp.float32)                               # (TB, S, D)
    summary = jnp.sum(xf, axis=1, keepdims=True) * summary_scale      # (TB, 1, D)
    energies = jnp.sum(xf * summary, axis=-1)                         # (TB, S)

    # Softmax over the set dimension (max-subtracted). Exact division: there is
    # huge EUP/VPU slack, so the approximate reciprocal would buy nothing and
    # only cost ~1e-3 normalization error.
    m = jnp.max(energies, axis=-1, keepdims=True)
    e = jnp.exp(energies - m)
    attn = e / jnp.sum(e, axis=-1, keepdims=True)

    o_ref[...] = attn.astype(o_ref.dtype)


def _tpu_vmem_and_min_blocks():
    """Physical VMEM bytes and the minimum useful grid-block count."""
    vmem = 128 << 20
    try:
        info = pltpu.get_tpu_info()
        vmem = int(getattr(info, "vmem_capacity_bytes", vmem) or vmem)
    except Exception:
        pass
    # v7x exposes 64 MiB VMEM per TensorCore and has 2 TCs/chip -> want >= 2
    # grid blocks so dimension_semantics=("parallel",) can shard them.
    # v5e/v6e: 128 MiB VMEM, 1 TC -> a single block is fine.
    min_blocks = 2 if vmem <= (64 << 20) else 1
    return vmem, min_blocks


def _choose_block_batch(B, S, D, itemsize, tile_budget_bytes, min_blocks):
    """Batch-tile size: fits the per-buffer budget, 8-aligned when it tiles B,
    and yields at least `min_blocks` grid steps (megacore)."""
    bytes_per_row = max(1, S * D * itemsize)
    rows = max(1, tile_budget_bytes // bytes_per_row)
    if B <= 8 or (rows >= B and min_blocks <= 1):
        # Whole batch as one block: too small to split into 8-aligned tiles, or
        # there is only one TensorCore to feed.
        return B
    tb = min(rows, B)
    if min_blocks > 1:
        # Keep every TensorCore busy: at least `min_blocks` grid steps.
        tb = min(tb, -(-B // min_blocks))
    tb = max(8, (tb // 8) * 8)     # 8-aligned second-minor dim of the (B, S) output
    return tb


def attention_forward(x, attention_type="dot", summary_type="mean", block_batch=None):
    assert attention_type in ("dot", "cosine", "learned")
    assert summary_type in ("mean", "sum")
    if attention_type != "dot":
        # TODO(synk): 'learned'/'cosine' are not implementable from the source module.
        raise NotImplementedError(
            "Only 'dot' attention is implementable from the source module.")

    B, S, D = x.shape
    itemsize = jnp.dtype(x.dtype).itemsize

    vmem_capacity, min_blocks = _tpu_vmem_and_min_blocks()
    # Per-input-buffer tile budget: bigger tiles amortize the ~0.35 us/step grid
    # overhead; v7x (64 MiB VMEM, faster HBM) gets 8 MiB, v5e/v6e get 16 MiB.
    tile_budget = (8 << 20) if min_blocks > 1 else (16 << 20)

    if block_batch is not None:
        tb = int(block_batch)
        if tb >= B:
            tb = B
        else:
            assert tb % 8 == 0, "block_batch must be a multiple of 8 when it tiles the batch"
    else:
        tb = _choose_block_batch(B, S, D, itemsize, tile_budget, min_blocks)

    # Ragged batches are handled by the cdiv grid + masked last block (garbage
    # rows in the last block only affect their own dropped outputs), so no
    # full-array jnp.pad / extra HBM copy is needed.
    grid = (pl.cdiv(B, tb),)

    summary_scale = (1.0 / S) if summary_type == "mean" else 1.0
    kernel = functools.partial(_attention_kernel, summary_scale=summary_scale)

    tile_bytes = tb * S * D * itemsize
    out_tile_bytes = tb * S * itemsize
    vmem_cap = int(vmem_capacity * 3 // 4)          # leave headroom under physical VMEM

    pipeline_mode = None
    needed = 2 * tile_bytes + 2 * out_tile_bytes + (4 << 20)
    if needed > vmem_cap:
        # Huge S*D rows: single-buffer the input instead of OOMing VMEM.
        # TODO(synk): for shapes where even one tb=8 slab does not fit, tile S on
        # a second 'arbitrary' grid axis with an online-softmax scratch.
        pipeline_mode = pl.Buffered(1)
        needed = tile_bytes + 2 * out_tile_bytes + (4 << 20)
    vmem_limit = int(min(max(32 << 20, needed), vmem_cap))

    if pipeline_mode is not None:
        in_spec = pl.BlockSpec((tb, S, D), lambda i: (i, 0, 0), pipeline_mode=pipeline_mode)
    else:
        in_spec = pl.BlockSpec((tb, S, D), lambda i: (i, 0, 0))

    cost = pl.CostEstimate(
        flops=3 * B * S * D + 5 * B * S,
        transcendentals=B * S,
        bytes_accessed=B * S * D * itemsize + B * S * itemsize,
    )

    # TODO(synk): for shapes where D is small enough that output bytes are a
    # visible fraction of input bytes and S < 128, emit the output transposed as
    # (S, B) with a 128-multiple batch tile for lane-dense stores.
    out = pl.pallas_call(
        kernel,
        out_shape=jax.ShapeDtypeStruct((B, S), x.dtype),
        grid=grid,
        in_specs=[in_spec],
        out_specs=pl.BlockSpec((tb, S), lambda i: (i, 0)),
        compiler_params=pltpu.CompilerParams(
            # Batch tiles are independent -> shard across v7x's two TensorCores;
            # harmless no-op on v5e/v6e.
            dimension_semantics=("parallel",),
            vmem_limit_bytes=vmem_limit,
        ),
        cost_estimate=cost,
    )(x)

    return out


def _reference(x, summary_type="mean"):
    # Pure-JAX reference mirroring the PyTorch forward (f32 math).
    xf = x.astype(jnp.float32)
    if summary_type == "mean":
        summary = jnp.mean(xf, axis=1, keepdims=True)
    else:
        summary = jnp.sum(xf, axis=1, keepdims=True)
    energies = jnp.sum(summary * xf, axis=-1)
    return jax.nn.softmax(energies, axis=1)


if __name__ == "__main__":
    key = jax.random.PRNGKey(0)
    B, S, D = 2, 8, 32
    x = jax.random.normal(key, (B, S, D), dtype=jnp.float32)

    out = attention_forward(x, attention_type="dot", summary_type="mean")
    out = jax.block_until_ready(out)
    ref = _reference(x, "mean")
    assert out.shape == (B, S)
    assert jnp.max(jnp.abs(out - ref)) < 1e-5, "mismatch vs reference (mean)"

    # 'sum' summary, tiled + ragged-batch (masked last block) path.
    B2 = 12
    x2 = jax.random.normal(jax.random.PRNGKey(1), (B2, S, D), dtype=jnp.float32)
    out2 = jax.block_until_ready(
        attention_forward(x2, attention_type="dot", summary_type="sum", block_batch=8))
    ref2 = _reference(x2, "sum")
    assert out2.shape == (B2, S)
    assert jnp.max(jnp.abs(out2 - ref2)) < 1e-5, "mismatch vs reference (sum/tiled)"

    # bf16 input: contraction stays in f32 inside the kernel.
    B3 = 16
    x3 = jax.random.normal(jax.random.PRNGKey(2), (B3, S, D), dtype=jnp.bfloat16)
    out3 = jax.block_until_ready(
        attention_forward(x3, attention_type="dot", summary_type="mean"))
    ref3 = _reference(x3, "mean")
    assert out3.shape == (B3, S)
    assert jnp.max(jnp.abs(out3.astype(jnp.float32) - ref3)) < 2e-2, "mismatch vs reference (bf16)"

    print("KERNEL_OK")
</pallas_src>

<mosaic_0001>
module attributes {stable_mosaic.version = 11 : i64} {
  func.func @_attention_kernel(%arg0: i32, %arg1: memref<2x8x32xf32, #tpu.memory_space<vmem>>, %arg2: memref<2x8xf32, #tpu.memory_space<vmem>>) attributes {dimension_semantics = [#tpu.dimension_semantics<parallel>], iteration_bounds = array<i64: 1>, scalar_prefetch = 0 : i64, scratch_operands = 0 : i64, tpu.core_type = #tpu.core_type<tc>, window_params = [{transform_indices = @transform_0, window_bounds = array<i64: 2, 8, 32>}, {transform_indices = @transform_1, window_bounds = array<i64: 2, 8>}]} {
    %c0 = arith.constant 0 : index
    %c0_0 = arith.constant 0 : index
    %c0_1 = arith.constant 0 : index
    %0 = vector.load %arg1[%c0, %c0_0, %c0_1] : memref<2x8x32xf32, #tpu.memory_space<vmem>>, vector<2x8x32xf32>
    %cst = arith.constant dense<0.000000e+00> : vector<2x32xf32>
    %1 = vector.multi_reduction <add>, %0, %cst [1] : vector<2x8x32xf32> to vector<2x32xf32>
    %2 = vector.shape_cast %1 : vector<2x32xf32> to vector<2x1x32xf32>
    %cst_2 = arith.constant 1.250000e-01 : f32
    %3 = vector.broadcast %cst_2 : f32 to vector<2x1x32xf32>
    %4 = arith.mulf %2, %3 : vector<2x1x32xf32>
    %5 = vector.broadcast %4 : vector<2x1x32xf32> to vector<2x8x32xf32>
    %6 = arith.mulf %0, %5 : vector<2x8x32xf32>
    %cst_3 = arith.constant dense<0.000000e+00> : vector<2x8xf32>
    %7 = vector.multi_reduction <add>, %6, %cst_3 [2] : vector<2x8x32xf32> to vector<2x8xf32>
    %cst_4 = arith.constant dense<0xFF800000> : vector<2xf32>
    %8 = vector.multi_reduction <maximumf>, %7, %cst_4 [1] : vector<2x8xf32> to vector<2xf32>
    %9 = vector.shape_cast %8 : vector<2xf32> to vector<2x1xf32>
    %10 = vector.broadcast %9 : vector<2x1xf32> to vector<2x8xf32>
    %11 = arith.subf %7, %10 : vector<2x8xf32>
    %12 = math.exp %11 : vector<2x8xf32>
    %cst_5 = arith.constant dense<0.000000e+00> : vector<2xf32>
    %13 = vector.multi_reduction <add>, %12, %cst_5 [1] : vector<2x8xf32> to vector<2xf32>
    %14 = vector.shape_cast %13 : vector<2xf32> to vector<2x1xf32>
    %15 = vector.broadcast %14 : vector<2x1xf32> to vector<2x8xf32>
    %16 = arith.divf %12, %15 : vector<2x8xf32>
    %c0_6 = arith.constant 0 : index
    %c0_7 = arith.constant 0 : index
    %17 = vector.load %arg2[%c0_6, %c0_7] : memref<2x8xf32, #tpu.memory_space<vmem>>, vector<2x8xf32>
    tpu.vector_store %arg2[%c0_6, %c0_7], %16 {strides = array<i32>} : memref<2x8xf32, #tpu.memory_space<vmem>>, vector<2x8xf32>,
    return
  }
  func.func @transform_0(%arg0: i32) -> (i32, i32, i32) {
    %c0_i32 = arith.constant 0 : i32
    %c0_i32_0 = arith.constant 0 : i32
    %c0_i32_1 = arith.constant 0 : i32
    return %arg0, %c0_i32, %c0_i32_0 : i32, i32, i32
  }
  func.func @transform_1(%arg0: i32) -> (i32, i32) {
    %c0_i32 = arith.constant 0 : i32
    %c0_i32_0 = arith.constant 0 : i32
    return %arg0, %c0_i32 : i32, i32
  }
}

</mosaic_0001>

<llo_original>
// kernel: tpu_custom_call.1
$region0: #{tpu_custom_call.1}
  #allocation0 [shape = 'u32[]', space=smem, size = 0x4, offset = 0x4, fixed_abs, tag = 'smem constant byte address 0x4 - core index']
  #allocation1 [shape = 'u32[72,128]{1,0:T(1,128)}', space=vmem, size = 0x9000, scoped, tag = 'internal scratch']
  %s0 = inlined_call_operand.hbm [shape: f32[2,8,32], index: 0, kind: input, shape index: {}]
  %s1 = inlined_call_operand.hbm [shape: f32[2,8], index: 1, kind: output, shape index: {}]
  %s2 = sld [smem:[#allocation0]]
  $region18: #{tpu_custom_call.1} parent=0
    _
  %s4 = ssub.s32 1, %s2
  %s5 = scalar_select 0, %s4, %s2
  $region1: #{tpu_custom_call.1} parent=0
    #allocation2 [shape = 'u8[8192]{0}', space=vmem, size = 0x2000, scoped, tag = 'input window, operand 0, single buffered']
    #allocation3 [shape = 's32[1]{0}', space=sflag, size = 0x4, scoped, tag = 'scoped memory for tpu_custom_call.1']
    #allocation4 [shape = 's32[1]{0}', space=sflag, size = 0x4, scoped, tag = 'scoped memory for tpu_custom_call.1']
    #allocation5 [shape = 'u8[1024]{0}', space=vmem, size = 0x400, scoped, tag = 'output window, operand 0, single buffered']
    %6 = vsyncpa [#allocation3], 0
    %7 = vsyncpa [#allocation4], 0
    // Predicated region
    $region2: #{tpu_custom_call.1} parent=1 // pred_check
      _
    $region3: #{tpu_custom_call.1} parent=1 // pred_check_branch
      %9 = sbr.rel (0) target = $region5
    $region4: #{tpu_custom_call.1} parent=1 // pred_region
      %11 = vsyncadd [#allocation3], 0
      %s12 = sshll.u32 %s0, 4
      %s13 = int_to_ptr.hbm [resolvable:$true] %s12
      %s14 = sshll.u32 [#allocation2], 4
      %s15 = int_to_ptr.vmem [resolvable:$true] %s14
      %20 = dma.hbm_to_vmem [thread:$0]  %s13, 256, %s15, [#allocation3], 128, 128, 8
    $region5: #{tpu_custom_call.1} parent=1 // pred_fallthru
      _
    // Predicated region
    $region6: #{tpu_custom_call.1} parent=1 // pred_check
      _
    $region7: #{tpu_custom_call.1} parent=1 // pred_check_branch
      %22 = sbr.rel (0) target = $region9
    $region8: #{tpu_custom_call.1} parent=1 // pred_region
      %24 = dma.done [#allocation3], 256
    $region9: #{tpu_custom_call.1} parent=1 // pred_fallthru
      _
    %v25 = vld [vmem:[#allocation2] sm:$0xff]
    %v26 = vld [vmem:[#allocation2 + $0x8] sm:$0xff]
    %vm27 = vcmask 261120
    %v28 = vsel %vm27, %v25, 0.0
    %v29 = vrot.slane %v28, 4
    %v30 = vadd.f32 %v28, %v29
    %v31 = vrot.slane %v30, 2
    %v32 = vadd.f32 %v30, %v31
    %v33 = vrot.slane %v32, 1
    %v34 = vadd.f32 %v32, %v33
    %v35 = vsel %vm27, %v26, 0.0
    %v36 = vrot.slane %v35, 4
    %v37 = vadd.f32 %v35, %v36
    %v38 = vrot.slane %v37, 2
    %v39 = vadd.f32 %v37, %v38
    %v40 = vrot.slane %v39, 1
    %v41 = vadd.f32 %v39, %v40
    %v42 = vmul.f32 %v34, 0.125
    %v43 = vmul.f32 %v41, 0.125
    %v44 = vmul.f32 %v25, %v42
    %v45 = vmul.f32 %v26, %v43
    %v46 = vsel %vm27, %v44, 0.0
    %47 = vadd.xlane.f32.xlu0 %v46
    %v48 = vpop.xlane.xlu0 %47
    %v49 = vsel %vm27, %v45, 0.0
    %50 = vadd.xlane.f32.xlu0 %v49
    %v51 = vpop.xlane.xlu0 %50
    %v54 = vlaneseq
    %v55 = vand.u32 %v54, 127
    %v56 = vperm.slane %v48, %v55
    %v57 = vperm.slane %v51, %v55
    %vm58 = vcmask 1041409
    %v59 = vsel %vm58, %v57, %v56
    %vm61 = vcmask 58368
    %v62 = vsel %vm61, %v59, -inf
    %63 = vmax.xlane.f32.xlu0 %v62
    %v64 = vpop.xlane.xlu0 %63
    %v66 = vperm.slane %v64, 0
    %v67 = vperm.slane %v64, 1
    %v70 = vsub.f32 %v48, %v66
    %v71 = vsub.f32 %v51, %v67
    %v72 = vmul.f32 %v70, 1.442695
    %v73 = vpow.pop %v72
    %v74 = vmul.f32 %v71, 1.442695
    %v75 = vpow.pop %v74
    %78 = vset.pattern.permute.xlu0 0
    %79 = vperm.xlu0 %78, %v73
    %v80 = vpop.permute.xlu0 %79
    %81 = vset.pattern.permute.xlu0 0
    %82 = vperm.xlu0 %81, %v75
    %v83 = vpop.permute.xlu0 %82
    %v84 = vperm.slane %v80, %v55
    %v85 = vperm.slane %v83, %v55
    %v86 = vsel %vm58, %v85, %v84
    %v88 = vsel %vm61, %v86, 0.0
    %89 = vadd.xlane.f32.xlu0 %v88
    %v90 = vpop.xlane.xlu0 %89
    %v92 = vperm.slane %v90, 0
    %v93 = vperm.slane %v90, 1
    %v96 = vrcp.pop %v92
    %v97 = vmul.f32 %v92, %v96
    %v98 = vsub.f32 1.0, %v97
    %v99 = vmul.f32 %v96, %v98
    %v100 = vadd.f32 %v96, %v99
    %vm101 = vweird.f32 %v92
    %vm102 = vweird.f32 %v96
    %vm103 = vmor %vm101, %vm102
    %v104 = vsel %vm103, %v96, %v100
    %v105 = vand.u32 2147483647, %v92
    %vm106 = vcmp.eq.f32.partialorder %v105, 8.507059e+37
    %v107 = vand.u32 %v92, 2147483648
    %v108 = vor.u32 1.1754944e-38, %v107
    %v109 = vsel %vm106, %v108, %v104
    %v110 = vmul.f32 %v73, %v109
    %v111 = vrcp.pop %v93
    %v112 = vmul.f32 %v93, %v111
    %v113 = vsub.f32 1.0, %v112
    %v114 = vmul.f32 %v111, %v113
    %v115 = vadd.f32 %v111, %v114
    %vm116 = vweird.f32 %v93
    %vm117 = vweird.f32 %v111
    %vm118 = vmor %vm116, %vm117
    %v119 = vsel %vm118, %v111, %v115
    %v120 = vand.u32 2147483647, %v93
    %vm121 = vcmp.eq.f32.partialorder %v120, 8.507059e+37
    %v122 = vand.u32 %v93, 2147483648
    %v123 = vor.u32 1.1754944e-38, %v122
    %v124 = vsel %vm121, %v123, %v119
    %v125 = vmul.f32 %v75, %v124
    %128 = vset.pattern.permute.xlu0 0
    %129 = vperm.xlu0 %128, %v110
    %v130 = vpop.permute.xlu0 %129
    %131 = vset.pattern.permute.xlu0 0
    %132 = vperm.xlu0 %131, %v125
    %v133 = vpop.permute.xlu0 %132
    %v134 = vperm.slane %v130, %v55
    %v135 = vperm.slane %v133, %v55
    %v136 = vsel %vm58, %v135, %v134
    %138 = vst.msk [vmem:[#allocation5] sm:$0x3] %vm61, %v136
    // Predicated region
    $region10: #{tpu_custom_call.1} parent=1 // pred_check
      _
    $region11: #{tpu_custom_call.1} parent=1 // pred_check_branch
      %140 = sbr.rel (0) target = $region13
    $region12: #{tpu_custom_call.1} parent=1 // pred_region
      %142 = vsyncadd [#allocation4], 0
      %s144 = sshll.u32 [#allocation5], 4
      %s145 = int_to_ptr.vmem [resolvable:$true] %s144
      %s146 = sshll.u32 %s1, 4
      %s147 = int_to_ptr.hbm [resolvable:$true] %s146
      %149 = dma.vmem_to_hbm [thread:$0]  %s145, 32, %s147, [#allocation4]
    $region13: #{tpu_custom_call.1} parent=1 // pred_fallthru
      _
    // Predicated region
    $region14: #{tpu_custom_call.1} parent=1 // pred_check
      _
    $region15: #{tpu_custom_call.1} parent=1 // pred_check_branch
      %151 = sbr.rel (0) target = $region17
    $region16: #{tpu_custom_call.1} parent=1 // pred_region
      %153 = dma.done [#allocation4], 32
    $region17: #{tpu_custom_call.1} parent=1 // pred_fallthru
      _
    %154 = vsyncpa [#allocation3], 1
    %155 = vsyncpa [#allocation4], 1

</llo_original>
